<compile_context>
chip_gen: v5e
topology: v5e:2x2
jax: 0.10.0
libtpu: 0.0.40
codegen_flags: <defaults>
</compile_context>

<pallas_src>
import functools

import jax
import jax.numpy as jnp
from jax.experimental import pallas as pl
from jax.experimental.pallas import tpu as pltpu


def _round_up(x, m):
    return ((x + m - 1) // m) * m


def _disc_kernel(n_mlp, n_fc, *refs):
    """refs = [pc_tile, (w, b) x n_mlp, (w, b) x n_fc, out_ref, gmax_scratch]."""
    pc_ref = refs[0]
    out_ref = refs[-2]
    gmax = refs[-1]                      # (1, d_last_pad) f32 running max
    params = refs[1:-2]

    n_id = pl.program_id(1)
    n_last = pl.num_programs(1) - 1

    @pl.when(n_id == 0)
    def _():
        gmax[...] = jnp.full_like(gmax, -jnp.inf)

    # ---- shared point-wise MLP over this tile of points (already 2-D) ----
    x = pc_ref[...]                      # (tile_n, C_in) bf16
    tn = x.shape[0]
    for i in range(n_mlp):
        w = params[2 * i][...]           # (d_in, d_out) bf16, d_out % 128 == 0
        b = params[2 * i + 1][...]       # (1, d_out) f32
        d_in, d_out = w.shape
        if i == 0 and d_in <= 8:
            # Tiny contraction depth: VPU FMAs instead of a nearly-empty MXU pass.
            xf = x.astype(jnp.float32)
            wf = w.astype(jnp.float32)
            y = jnp.zeros((tn, d_out), jnp.float32)
            for c in range(d_in):
                y = y + xf[:, c:c + 1] * wf[c:c + 1, :]
            y = y + b
        else:
            y = jnp.dot(x.astype(jnp.bfloat16), w,
                        preferred_element_type=jnp.float32) + b
        if i < n_mlp - 1:
            y = jnp.maximum(y, 0.0)
        x = y                            # f32 activations between layers

    # ---- fold this tile's per-point max into the running global feature ----
    tile_max = jnp.max(x, axis=0, keepdims=True)         # (1, d_last_pad) f32
    gmax[...] = jnp.maximum(gmax[...], tile_max)

    # ---- last point tile: FC head on the pooled feature, write logits ----
    @pl.when(n_id == n_last)
    def _():
        g = gmax[...]                                    # (1, d_last_pad) f32
        for j in range(n_fc):
            w = params[2 * (n_mlp + j)][...]
            b = params[2 * (n_mlp + j) + 1][...]
            g = jnp.dot(g.astype(jnp.bfloat16), w,
                        preferred_element_type=jnp.float32) + b
            if j < n_fc - 1:
                g = jnp.maximum(g, 0.0)
        out_ref[...] = g.astype(out_ref.dtype)


def pointnet_discriminator(pc, mlp_params, fc_params, *, tile_n=512):
    """pc: (B, N, mlp_dims[0]) float. Returns logits (B, fc_dims[-1]) f32."""
    B, N, C_in = pc.shape
    n_mlp, n_fc = len(mlp_params), len(fc_params)
    all_params = list(mlp_params) + list(fc_params)
    out_dim = all_params[-1][0].shape[1]

    # --- pad every hidden/output channel dim to a multiple of 128 (lane-dense
    #     MXU columns + unmasked stores). Weights -> bf16 (MXU native), biases
    #     stay f32 (added into the f32 accumulator). Zero pads keep math exact.
    flat = []
    in_pad = C_in                        # raw input channels stay unpadded
    for (w, b) in all_params:
        d_in, d_out = w.shape
        out_p = _round_up(d_out, 128)
        w_p = jnp.zeros((in_pad, out_p), jnp.bfloat16).at[:d_in, :d_out].set(
            w.astype(jnp.bfloat16))
        b_p = jnp.zeros((1, out_p), jnp.float32).at[:, :d_out].set(
            b.reshape(1, -1).astype(jnp.float32))
        flat.extend([w_p, b_p])
        in_pad = out_p
    d_last_pad = flat[2 * (n_mlp - 1)].shape[1]
    out_pad = flat[-2].shape[1]

    # --- tile the points axis; pad N by duplicating the last point (max-pool
    #     is unchanged by duplicates) so it divides evenly.
    tile = max(8, (min(tile_n, N) // 8) * 8)
    n_tiles = -(-N // tile)
    n_pad = n_tiles * tile
    if n_pad != N:
        pad = jnp.broadcast_to(pc[:, N - 1:N, :], (B, n_pad - N, C_in))
        pc = jnp.concatenate([pc, pad], axis=1)
    pc = pc.astype(jnp.bfloat16)         # halves pc DMA bytes; f32 accumulation

    # --- advisory cost estimate for XLA scheduling around the custom call.
    flops = 0
    d_in = C_in
    for i in range(n_mlp):
        d_out = flat[2 * i].shape[1]
        flops += 2 * B * n_pad * d_in * d_out
        d_in = d_out
    for j in range(n_fc):
        d_out = flat[2 * (n_mlp + j)].shape[1]
        flops += 2 * B * d_in * d_out
        d_in = d_out
    bytes_accessed = (pc.size * pc.dtype.itemsize
                      + sum(a.size * a.dtype.itemsize for a in flat)
                      + B * out_pad * 4)

    in_specs = [pl.BlockSpec((None, tile, C_in), lambda b, n: (b, n, 0))]
    for arr in flat:                     # small weights/biases: resident blocks
        in_specs.append(pl.BlockSpec(arr.shape, lambda b, n: (0, 0)))

    kernel = functools.partial(_disc_kernel, n_mlp, n_fc)
    out = pl.pallas_call(
        kernel,
        out_shape=jax.ShapeDtypeStruct((B, 1, out_pad), jnp.float32),
        grid_spec=pltpu.PrefetchScalarGridSpec(
            num_scalar_prefetch=0,
            grid=(B, n_tiles),
            in_specs=in_specs,
            out_specs=pl.BlockSpec((None, 1, out_pad), lambda b, n: (b, 0, 0)),
            scratch_shapes=[pltpu.VMEM((1, d_last_pad), jnp.float32)],
        ),
        compiler_params=pltpu.CompilerParams(
            dimension_semantics=("parallel", "arbitrary"),
            vmem_limit_bytes=64 * 1024 * 1024,
        ),
        cost_estimate=pl.CostEstimate(
            flops=flops, transcendentals=0, bytes_accessed=bytes_accessed),
    )(pc, *flat)
    return out[:, 0, :out_dim]


# ----------------- parameter construction (deterministic) & references -----------------

def _init_linear(key, d_in, d_out):
    kw, kb = jax.random.split(key)
    bound = 1.0 / float(d_in) ** 0.5
    w = jax.random.uniform(kw, (d_in, d_out), jnp.float32, -bound, bound)
    b = jax.random.uniform(kb, (1, d_out), jnp.float32, -bound, bound)
    return w, b


def _build_mlp_params(key, dims):
    # mirrors the PyTorch loop: Linear(dims[i], dims[i+1]) for i in 0..len-2,
    # ReLU on every layer except the final one.
    params = []
    for i in range(len(dims) - 1):
        key, sub = jax.random.split(key)
        params.append(_init_linear(sub, dims[i], dims[i + 1]))
    return params, key


def _reference_forward(pc, mlp_params, fc_params):
    """Pure-f32 JAX reference of the PyTorch module."""
    x = pc
    for i, (w, b) in enumerate(mlp_params):
        x = jnp.dot(x, w) + b
        if i < len(mlp_params) - 1:
            x = jnp.maximum(x, 0.0)
    g = jnp.max(x, axis=1)
    for j, (w, b) in enumerate(fc_params):
        g = jnp.dot(g, w) + b
        if j < len(fc_params) - 1:
            g = jnp.maximum(g, 0.0)
    return g


def _reference_matched(pc, mlp_params, fc_params):
    """JAX reference using the kernel's numerics: bf16 dot operands, f32 accumulate."""
    x = pc.astype(jnp.float32)
    for i, (w, b) in enumerate(mlp_params):
        x = jnp.dot(x.astype(jnp.bfloat16), w.astype(jnp.bfloat16),
                    preferred_element_type=jnp.float32) + b
        if i < len(mlp_params) - 1:
            x = jnp.maximum(x, 0.0)
    g = jnp.max(x, axis=1)
    for j, (w, b) in enumerate(fc_params):
        g = jnp.dot(g.astype(jnp.bfloat16), w.astype(jnp.bfloat16),
                    preferred_element_type=jnp.float32) + b
        if j < len(fc_params) - 1:
            g = jnp.maximum(g, 0.0)
    return g


if __name__ == "__main__":
    mlp_dims = [3, 32, 64]      # pointnet shared-MLP feature dims
    fc_dims = [64, 32, 1]       # discriminator FC head dims (logit)
    B, N = 2, 200               # small; N deliberately not a multiple of the tile

    key = jax.random.PRNGKey(0)
    key, k_pc = jax.random.split(key)
    pc = jax.random.normal(k_pc, (B, N, mlp_dims[0]), jnp.float32)

    mlp_params, key = _build_mlp_params(key, mlp_dims)
    fc_params, key = _build_mlp_params(key, fc_dims)

    logits = pointnet_discriminator(pc, mlp_params, fc_params, tile_n=64)
    logits = jax.block_until_ready(logits)
    assert logits.shape == (B, fc_dims[-1])

    ref_bf16 = _reference_matched(pc, mlp_params, fc_params)
    err_b = float(jnp.max(jnp.abs(logits - ref_bf16)))
    assert jnp.allclose(logits, ref_bf16, atol=1e-2, rtol=1e-2), \
        f"mismatch vs bf16-matched reference (max abs err {err_b})"

    ref_f32 = _reference_forward(pc, mlp_params, fc_params)
    err_f = float(jnp.max(jnp.abs(logits - ref_f32)))
    assert jnp.allclose(logits, ref_f32, atol=1e-1, rtol=1e-1), \
        f"mismatch vs f32 reference (max abs err {err_f})"

    print("KERNEL_OK")
</pallas_src>

<mosaic_0001>
module attributes {stable_mosaic.version = 11 : i64} {
  func.func @_disc_kernel(%arg0: i32, %arg1: i32, %arg2: memref<1x64x3xbf16, #tpu.memory_space<vmem>>, %arg3: memref<3x128xbf16, #tpu.memory_space<vmem>>, %arg4: memref<1x128xf32, #tpu.memory_space<vmem>>, %arg5: memref<128x128xbf16, #tpu.memory_space<vmem>>, %arg6: memref<1x128xf32, #tpu.memory_space<vmem>>, %arg7: memref<128x128xbf16, #tpu.memory_space<vmem>>, %arg8: memref<1x128xf32, #tpu.memory_space<vmem>>, %arg9: memref<128x128xbf16, #tpu.memory_space<vmem>>, %arg10: memref<1x128xf32, #tpu.memory_space<vmem>>, %arg11: memref<1x1x128xf32, #tpu.memory_space<vmem>>, %arg12: memref<1x128xf32, #tpu.memory_space<vmem>>) attributes {dimension_semantics = [#tpu.dimension_semantics<parallel>, #tpu.dimension_semantics<arbitrary>], iteration_bounds = array<i64: 2, 4>, scalar_prefetch = 0 : i64, scratch_operands = 1 : i64, tpu.core_type = #tpu.core_type<tc>, window_params = [{transform_indices = @transform_0, window_bounds = array<i64: 1, 64, 3>}, {pipeline_mode = #tpu.pipeline_mode<synchronous>, transform_indices = @transform_1, window_bounds = array<i64: 3, 128>}, {pipeline_mode = #tpu.pipeline_mode<synchronous>, transform_indices = @transform_2, window_bounds = array<i64: 1, 128>}, {pipeline_mode = #tpu.pipeline_mode<synchronous>, transform_indices = @transform_3, window_bounds = array<i64: 128, 128>}, {pipeline_mode = #tpu.pipeline_mode<synchronous>, transform_indices = @transform_4, window_bounds = array<i64: 1, 128>}, {pipeline_mode = #tpu.pipeline_mode<synchronous>, transform_indices = @transform_5, window_bounds = array<i64: 128, 128>}, {pipeline_mode = #tpu.pipeline_mode<synchronous>, transform_indices = @transform_6, window_bounds = array<i64: 1, 128>}, {pipeline_mode = #tpu.pipeline_mode<synchronous>, transform_indices = @transform_7, window_bounds = array<i64: 128, 128>}, {pipeline_mode = #tpu.pipeline_mode<synchronous>, transform_indices = @transform_8, window_bounds = array<i64: 1, 128>}, {transform_indices = @transform_9, window_bounds = array<i64: 1, 1, 128>}]} {
    %c0_i32 = arith.constant 0 : i32
    %0 = arith.cmpi eq, %arg1, %c0_i32 : i32
    %1 = arith.extui %0 : i1 to i32
    %c0_i32_0 = arith.constant 0 : i32
    %2 = arith.cmpi ne, %1, %c0_i32_0 : i32
    scf.if %2 {
      %cst_19 = arith.constant 0xFF800000 : f32
      %46 = vector.broadcast %cst_19 : f32 to vector<1x128xf32>
      %c0_20 = arith.constant 0 : index
      %c0_21 = arith.constant 0 : index
      %47 = vector.load %arg12[%c0_20, %c0_21] : memref<1x128xf32, #tpu.memory_space<vmem>>, vector<1x128xf32>
      tpu.vector_store %arg12[%c0_20, %c0_21], %46 {strides = array<i32>} : memref<1x128xf32, #tpu.memory_space<vmem>>, vector<1x128xf32>,
    } else {
    }
    %c0 = arith.constant 0 : index
    %c0_1 = arith.constant 0 : index
    %c0_2 = arith.constant 0 : index
    %3 = vector.load %arg2[%c0, %c0_1, %c0_2] : memref<1x64x3xbf16, #tpu.memory_space<vmem>>, vector<1x64x3xbf16>
    %4 = vector.shape_cast %3 : vector<1x64x3xbf16> to vector<64x3xbf16>
    %c0_3 = arith.constant 0 : index
    %c0_4 = arith.constant 0 : index
    %5 = vector.load %arg3[%c0_3, %c0_4] : memref<3x128xbf16, #tpu.memory_space<vmem>>, vector<3x128xbf16>
    %c0_5 = arith.constant 0 : index
    %c0_6 = arith.constant 0 : index
    %6 = vector.load %arg4[%c0_5, %c0_6] : memref<1x128xf32, #tpu.memory_space<vmem>>, vector<1x128xf32>
    %7 = arith.extf %4 : vector<64x3xbf16> to vector<64x3xf32>
    %8 = arith.extf %5 : vector<3x128xbf16> to vector<3x128xf32>
    %cst = arith.constant 0.000000e+00 : f32
    %9 = vector.broadcast %cst : f32 to vector<64x128xf32>
    %10 = vector.extract_strided_slice %7 {offsets = [0, 0], sizes = [64, 1], strides = [1, 1]} : vector<64x3xf32> to vector<64x1xf32>
    %11 = vector.extract_strided_slice %8 {offsets = [0, 0], sizes = [1, 128], strides = [1, 1]} : vector<3x128xf32> to vector<1x128xf32>
    %12 = vector.broadcast %10 : vector<64x1xf32> to vector<64x128xf32>
    %13 = vector.broadcast %11 : vector<1x128xf32> to vector<64x128xf32>
    %14 = arith.mulf %12, %13 : vector<64x128xf32>
    %15 = arith.addf %9, %14 : vector<64x128xf32>
    %16 = vector.extract_strided_slice %7 {offsets = [0, 1], sizes = [64, 1], strides = [1, 1]} : vector<64x3xf32> to vector<64x1xf32>
    %17 = vector.extract_strided_slice %8 {offsets = [1, 0], sizes = [1, 128], strides = [1, 1]} : vector<3x128xf32> to vector<1x128xf32>
    %18 = vector.broadcast %16 : vector<64x1xf32> to vector<64x128xf32>
    %19 = vector.broadcast %17 : vector<1x128xf32> to vector<64x128xf32>
    %20 = arith.mulf %18, %19 : vector<64x128xf32>
    %21 = arith.addf %15, %20 : vector<64x128xf32>
    %22 = vector.extract_strided_slice %7 {offsets = [0, 2], sizes = [64, 1], strides = [1, 1]} : vector<64x3xf32> to vector<64x1xf32>
    %23 = vector.extract_strided_slice %8 {offsets = [2, 0], sizes = [1, 128], strides = [1, 1]} : vector<3x128xf32> to vector<1x128xf32>
    %24 = vector.broadcast %22 : vector<64x1xf32> to vector<64x128xf32>
    %25 = vector.broadcast %23 : vector<1x128xf32> to vector<64x128xf32>
    %26 = arith.mulf %24, %25 : vector<64x128xf32>
    %27 = arith.addf %21, %26 : vector<64x128xf32>
    %28 = vector.broadcast %6 : vector<1x128xf32> to vector<64x128xf32>
    %29 = arith.addf %27, %28 : vector<64x128xf32>
    %cst_7 = arith.constant 0.000000e+00 : f32
    %30 = vector.broadcast %cst_7 : f32 to vector<64x128xf32>
    %31 = arith.maximumf %29, %30 : vector<64x128xf32>
    %c0_8 = arith.constant 0 : index
    %c0_9 = arith.constant 0 : index
    %32 = vector.load %arg5[%c0_8, %c0_9] : memref<128x128xbf16, #tpu.memory_space<vmem>>, vector<128x128xbf16>
    %c0_10 = arith.constant 0 : index
    %c0_11 = arith.constant 0 : index
    %33 = vector.load %arg6[%c0_10, %c0_11] : memref<1x128xf32, #tpu.memory_space<vmem>>, vector<1x128xf32>
    %34 = arith.truncf %31 : vector<64x128xf32> to vector<64x128xbf16>
    %cst_12 = arith.constant dense<0.000000e+00> : vector<64x128xf32>
    %35 = tpu.matmul %34, %32, %cst_12 {dimension_numbers = #tpu.dot_dimension_numbers<[1], [0], [0], [1], [0, 0, 1, 1], [], []>} : vector<64x128xbf16>, vector<128x128xbf16>, vector<64x128xf32> -> vector<64x128xf32>
    %36 = vector.broadcast %33 : vector<1x128xf32> to vector<64x128xf32>
    %37 = arith.addf %35, %36 : vector<64x128xf32>
    %cst_13 = arith.constant dense<0xFF800000> : vector<128xf32>
    %38 = vector.multi_reduction <maximumf>, %37, %cst_13 [0] : vector<64x128xf32> to vector<128xf32>
    %39 = vector.shape_cast %38 : vector<128xf32> to vector<1x128xf32>
    %c0_14 = arith.constant 0 : index
    %c0_15 = arith.constant 0 : index
    %40 = vector.load %arg12[%c0_14, %c0_15] : memref<1x128xf32, #tpu.memory_space<vmem>>, vector<1x128xf32>
    %41 = arith.maximumf %40, %39 : vector<1x128xf32>
    %c0_16 = arith.constant 0 : index
    %c0_17 = arith.constant 0 : index
    %42 = vector.load %arg12[%c0_16, %c0_17] : memref<1x128xf32, #tpu.memory_space<vmem>>, vector<1x128xf32>
    tpu.vector_store %arg12[%c0_16, %c0_17], %41 {strides = array<i32>} : memref<1x128xf32, #tpu.memory_space<vmem>>, vector<1x128xf32>,
    %c3_i32 = arith.constant 3 : i32
    %43 = arith.cmpi eq, %arg1, %c3_i32 : i32
    %44 = arith.extui %43 : i1 to i32
    %c0_i32_18 = arith.constant 0 : i32
    %45 = arith.cmpi ne, %44, %c0_i32_18 : i32
    scf.if %45 {
      %c0_19 = arith.constant 0 : index
      %c0_20 = arith.constant 0 : index
      %46 = vector.load %arg12[%c0_19, %c0_20] : memref<1x128xf32, #tpu.memory_space<vmem>>, vector<1x128xf32>
      %c0_21 = arith.constant 0 : index
      %c0_22 = arith.constant 0 : index
      %47 = vector.load %arg7[%c0_21, %c0_22] : memref<128x128xbf16, #tpu.memory_space<vmem>>, vector<128x128xbf16>
      %c0_23 = arith.constant 0 : index
      %c0_24 = arith.constant 0 : index
      %48 = vector.load %arg8[%c0_23, %c0_24] : memref<1x128xf32, #tpu.memory_space<vmem>>, vector<1x128xf32>
      %49 = arith.truncf %46 : vector<1x128xf32> to vector<1x128xbf16>
      %cst_25 = arith.constant dense<0.000000e+00> : vector<1x128xf32>
      %50 = tpu.matmul %49, %47, %cst_25 {dimension_numbers = #tpu.dot_dimension_numbers<[1], [0], [0], [1], [0, 0, 1, 1], [], []>} : vector<1x128xbf16>, vector<128x128xbf16>, vector<1x128xf32> -> vector<1x128xf32>
      %51 = arith.addf %50, %48 : vector<1x128xf32>
      %cst_26 = arith.constant 0.000000e+00 : f32
      %52 = vector.broadcast %cst_26 : f32 to vector<1x128xf32>
      %53 = arith.maximumf %51, %52 : vector<1x128xf32>
      %c0_27 = arith.constant 0 : index
      %c0_28 = arith.constant 0 : index
      %54 = vector.load %arg9[%c0_27, %c0_28] : memref<128x128xbf16, #tpu.memory_space<vmem>>, vector<128x128xbf16>
      %c0_29 = arith.constant 0 : index
      %c0_30 = arith.constant 0 : index
      %55 = vector.load %arg10[%c0_29, %c0_30] : memref<1x128xf32, #tpu.memory_space<vmem>>, vector<1x128xf32>
      %56 = arith.truncf %53 : vector<1x128xf32> to vector<1x128xbf16>
      %cst_31 = arith.constant dense<0.000000e+00> : vector<1x128xf32>
      %57 = tpu.matmul %56, %54, %cst_31 {dimension_numbers = #tpu.dot_dimension_numbers<[1], [0], [0], [1], [0, 0, 1, 1], [], []>} : vector<1x128xbf16>, vector<128x128xbf16>, vector<1x128xf32> -> vector<1x128xf32>
      %58 = arith.addf %57, %55 : vector<1x128xf32>
      %c0_32 = arith.constant 0 : index
      %c0_33 = arith.constant 0 : index
      %c0_34 = arith.constant 0 : index
      %59 = vector.load %arg11[%c0_32, %c0_33, %c0_34] : memref<1x1x128xf32, #tpu.memory_space<vmem>>, vector<1x1x128xf32>
      %60 = vector.shape_cast %59 : vector<1x1x128xf32> to vector<1x128xf32>
      %61 = vector.shape_cast %58 : vector<1x128xf32> to vector<1x1x128xf32>
      tpu.vector_store %arg11[%c0_32, %c0_33, %c0_34], %61 {strides = array<i32>} : memref<1x1x128xf32, #tpu.memory_space<vmem>>, vector<1x1x128xf32>,
    } else {
    }
    return
  }
  func.func @transform_0(%arg0: i32, %arg1: i32) -> (i32, i32, i32) {
    %c0_i32 = arith.constant 0 : i32
    %c0_i32_0 = arith.constant 0 : i32
    return %arg0, %arg1, %c0_i32 : i32, i32, i32
  }
  func.func @transform_1(%arg0: i32, %arg1: i32) -> (i32, i32) {
    %c0_i32 = arith.constant 0 : i32
    %c0_i32_0 = arith.constant 0 : i32
    %c0_i32_1 = arith.constant 0 : i32
    return %c0_i32, %c0_i32_0 : i32, i32
  }
  func.func @transform_2(%arg0: i32, %arg1: i32) -> (i32, i32) {
    %c0_i32 = arith.constant 0 : i32
    %c0_i32_0 = arith.constant 0 : i32
    %c0_i32_1 = arith.constant 0 : i32
    return %c0_i32, %c0_i32_0 : i32, i32
  }
  func.func @transform_3(%arg0: i32, %arg1: i32) -> (i32, i32) {
    %c0_i32 = arith.constant 0 : i32
    %c0_i32_0 = arith.constant 0 : i32
    %c0_i32_1 = arith.constant 0 : i32
    return %c0_i32, %c0_i32_0 : i32, i32
  }
  func.func @transform_4(%arg0: i32, %arg1: i32) -> (i32, i32) {
    %c0_i32 = arith.constant 0 : i32
    %c0_i32_0 = arith.constant 0 : i32
    %c0_i32_1 = arith.constant 0 : i32
    return %c0_i32, %c0_i32_0 : i32, i32
  }
  func.func @transform_5(%arg0: i32, %arg1: i32) -> (i32, i32) {
    %c0_i32 = arith.constant 0 : i32
    %c0_i32_0 = arith.constant 0 : i32
    %c0_i32_1 = arith.constant 0 : i32
    return %c0_i32, %c0_i32_0 : i32, i32
  }
  func.func @transform_6(%arg0: i32, %arg1: i32) -> (i32, i32) {
    %c0_i32 = arith.constant 0 : i32
    %c0_i32_0 = arith.constant 0 : i32
    %c0_i32_1 = arith.constant 0 : i32
    return %c0_i32, %c0_i32_0 : i32, i32
  }
  func.func @transform_7(%arg0: i32, %arg1: i32) -> (i32, i32) {
    %c0_i32 = arith.constant 0 : i32
    %c0_i32_0 = arith.constant 0 : i32
    %c0_i32_1 = arith.constant 0 : i32
    return %c0_i32, %c0_i32_0 : i32, i32
  }
  func.func @transform_8(%arg0: i32, %arg1: i32) -> (i32, i32) {
    %c0_i32 = arith.constant 0 : i32
    %c0_i32_0 = arith.constant 0 : i32
    %c0_i32_1 = arith.constant 0 : i32
    return %c0_i32, %c0_i32_0 : i32, i32
  }
  func.func @transform_9(%arg0: i32, %arg1: i32) -> (i32, i32, i32) {
    %c0_i32 = arith.constant 0 : i32
    %c0_i32_0 = arith.constant 0 : i32
    %c0_i32_1 = arith.constant 0 : i32
    return %arg0, %c0_i32, %c0_i32_0 : i32, i32, i32
  }
}

</mosaic_0001>

<llo_original>
// kernel: tpu_custom_call.1
$region0: #{tpu_custom_call.1}
  #allocation0 [shape = 'u32[]', space=smem, size = 0x4, offset = 0x4, fixed_abs, tag = 'smem constant byte address 0x4 - core index']
  #allocation1 [shape = 'u32[72,128]{1,0:T(1,128)}', space=vmem, size = 0x9000, scoped, tag = 'internal scratch']
  #allocation2 [shape = 'f32[1,128]{1,0:T(1,128)}', space=vmem, size = 0x200, scoped, tag = 'scratch operand']
  %s0 = inlined_call_operand.vmem [shape: bf16[2,256,3], index: 0, kind: input, shape index: {}]
  %s1 = inlined_call_operand.vmem [shape: bf16[3,128], index: 1, kind: input, shape index: {}]
  %s2 = inlined_call_operand.vmem [shape: f32[1,128], index: 2, kind: input, shape index: {}]
  %s3 = inlined_call_operand.vmem [shape: bf16[128,128], index: 3, kind: input, shape index: {}]
  %s4 = inlined_call_operand.vmem [shape: f32[1,128], index: 4, kind: input, shape index: {}]
  %s5 = inlined_call_operand.vmem [shape: bf16[128,128], index: 5, kind: input, shape index: {}]
  %s6 = inlined_call_operand.vmem [shape: f32[1,128], index: 6, kind: input, shape index: {}]
  %s7 = inlined_call_operand.vmem [shape: bf16[128,128], index: 7, kind: input, shape index: {}]
  %s8 = inlined_call_operand.vmem [shape: f32[1,128], index: 8, kind: input, shape index: {}]
  %s9 = inlined_call_operand.hbm [shape: f32[2,1,128], index: 9, kind: output, shape index: {}]
  %s10 = sld [smem:[#allocation0]]
  $region77: #{tpu_custom_call.1} parent=0
    _
  %s12 = ssub.s32 1, %s10
  %s13 = scalar_select 0, %s12, %s10
  $region1: #{tpu_custom_call.1} parent=0
    #allocation3 [shape = 'u8[1024]{0}', space=vmem, size = 0x400, scoped, tag = 'output window, operand 0']
    #allocation4 [shape = 's32[2]{0}', space=sflag, size = 0x8, scoped, tag = 'scoped memory for tpu_custom_call.1']
    %14 = vsyncpa [#allocation4], 0
    %s15 = scalar_lea.sflag [#allocation4], 1
    %16 = vsyncpa %s15, 0
    loop: start=0, step=1, limit=10
    $region2: #{tpu_custom_call.1} parent=1 // loop_pre_header
      _
    $region3: #{tpu_custom_call.1} parent=1 // loop_header
      %s18 = sphi 0, %s22
      %p19 = scmp.ge.s32.totalorder %s18, 10
      %s25 = sphi 0, %s37
      %s26 = sphi 0, %s33
      %s27 = sphi 0, %s25
      %s28 = sphi 0, %s26
      %s29 = sphi 0, %s27
      %s30 = sphi 0, %s28
      %s42 = sphi 0, %s44
      %s45 = sphi 0, %s42
      %s46 = sphi 0, %s45
      %s62 = sphi 0, %s46
      %s66 = sphi 0, %s66
      %s68 = sphi 0, %s66
      %s69 = sphi 0, %s68
      %s83 = sphi 0, %s69
      %s87 = sphi 0, %s87
      %s89 = sphi 0, %s87
      %s90 = sphi 0, %s89
      %s104 = sphi 0, %s90
      %s108 = sphi 0, %s108
      %s110 = sphi 0, %s108
      %s111 = sphi 0, %s110
      %s125 = sphi 0, %s111
      %s129 = sphi 0, %s129
      %s131 = sphi 0, %s129
      %s132 = sphi 0, %s131
      %s146 = sphi 0, %s132
      %s150 = sphi 0, %s150
      %s152 = sphi 0, %s150
      %s153 = sphi 0, %s152
      %s167 = sphi 0, %s153
      %s171 = sphi 0, %s171
      %s173 = sphi 0, %s171
      %s174 = sphi 0, %s173
      %s188 = sphi 0, %s174
      %s192 = sphi 0, %s192
      %s194 = sphi 0, %s192
      %s195 = sphi 0, %s194
      %s209 = sphi 0, %s195
      %s213 = sphi 0, %s213
      %s215 = sphi 0, %s213
      %s216 = sphi 0, %s215
      %s230 = sphi 0, %s216
      %s236 = sphi 0, %s238
      %s239 = sphi 0, %s236
      %s240 = sphi 0, %s239
      %s256 = sphi 0, %s240
    $region4: #{tpu_custom_call.1} parent=1 // loop_header_branch
      %21 = sbr.rel (%p19) target = $region8
    $region5: #{tpu_custom_call.1} parent=1 // loop_body
      %s23 = ssub.s32 %s18, 1
      %s24 = ssub.s32 %s18, 2
      %s31 = sadd.s32 1, %s26
      %p32 = scmp.ge.s32.totalorder %s31, 4
      %s33 = scalar_select %p32, 0, %s31
      %s34 = sadd.s32 1, %s25
      %s35 = scalar_select %p32, %s34, %s25
      %p36 = scmp.ge.s32.totalorder %s35, 2
      %s37 = scalar_select %p36, 0, %s35
      %s38 = ssub.s32 %s25, %s37
      %s39 = ssub.s32 %s26, %s33
      %s40 = sor.u32 %s38, %s39
      %p41 = scmp.eq.s32.totalorder %s40, 0
      %s43 = sadd.s32 %s42, 1
      %s44 = scalar_select %p41, %s42, %s43
      %p47 = pneg %p41
      %p48 = scmp.eq.s32.totalorder %s18, 7
      %p49 = por %p47, %p48
      %p50 = scmp.ne.s32.totalorder %s42, %s45
      %p51 = scmp.eq.s32.totalorder %s18, 0
      %p52 = por %p50, %p51
      %p53 = scmp.ne.s32.totalorder %s42, %s45
      %p54 = scmp.eq.s32.totalorder %s23, 7
      %p55 = por %p53, %p54
      %p56 = scmp.ne.s32.totalorder %s45, %s46
      %p57 = scmp.eq.s32.totalorder %s23, 0
      %p58 = por %p56, %p57
      %p59 = scmp.ne.s32.totalorder %s45, %s46
      %p60 = scmp.eq.s32.totalorder %s24, 7
      %p61 = por %p59, %p60
      %p63 = scmp.ne.s32.totalorder %s46, %s62
      %p64 = scmp.eq.s32.totalorder %s24, 0
      %p65 = por %p63, %p64
      %s67 = sadd.s32 %s66, 1
      %p70 = scmp.eq.s32.totalorder %s18, 7
      %p71 = scmp.ne.s32.totalorder %s66, %s68
      %p72 = scmp.eq.s32.totalorder %s18, 0
      %p73 = por %p71, %p72
      %p74 = scmp.ne.s32.totalorder %s66, %s68
      %p75 = scmp.eq.s32.totalorder %s23, 7
      %p76 = por %p74, %p75
      %p77 = scmp.ne.s32.totalorder %s68, %s69
      %p78 = scmp.eq.s32.totalorder %s23, 0
      %p79 = por %p77, %p78
      %p80 = scmp.ne.s32.totalorder %s68, %s69
      %p81 = scmp.eq.s32.totalorder %s24, 7
      %p82 = por %p80, %p81
      %p84 = scmp.ne.s32.totalorder %s69, %s83
      %p85 = scmp.eq.s32.totalorder %s24, 0
      %p86 = por %p84, %p85
      %s88 = sadd.s32 %s87, 1
      %p91 = scmp.eq.s32.totalorder %s18, 7
      %p92 = scmp.ne.s32.totalorder %s87, %s89
      %p93 = scmp.eq.s32.totalorder %s18, 0
      %p94 = por %p92, %p93
      %p95 = scmp.ne.s32.totalorder %s87, %s89
      %p96 = scmp.eq.s32.totalorder %s23, 7
      %p97 = por %p95, %p96
      %p98 = scmp.ne.s32.totalorder %s89, %s90
      %p99 = scmp.eq.s32.totalorder %s23, 0
      %p100 = por %p98, %p99
      %p101 = scmp.ne.s32.totalorder %s89, %s90
      %p102 = scmp.eq.s32.totalorder %s24, 7
      %p103 = por %p101, %p102
      %p105 = scmp.ne.s32.totalorder %s90, %s104
      %p106 = scmp.eq.s32.totalorder %s24, 0
      %p107 = por %p105, %p106
      %s109 = sadd.s32 %s108, 1
      %p112 = scmp.eq.s32.totalorder %s18, 7
      %p113 = scmp.ne.s32.totalorder %s108, %s110
      %p114 = scmp.eq.s32.totalorder %s18, 0
      %p115 = por %p113, %p114
      %p116 = scmp.ne.s32.totalorder %s108, %s110
      %p117 = scmp.eq.s32.totalorder %s23, 7
      %p118 = por %p116, %p117
      %p119 = scmp.ne.s32.totalorder %s110, %s111
      %p120 = scmp.eq.s32.totalorder %s23, 0
      %p121 = por %p119, %p120
      %p122 = scmp.ne.s32.totalorder %s110, %s111
      %p123 = scmp.eq.s32.totalorder %s24, 7
      %p124 = por %p122, %p123
      %p126 = scmp.ne.s32.totalorder %s111, %s125
      %p127 = scmp.eq.s32.totalorder %s24, 0
      %p128 = por %p126, %p127
      %s130 = sadd.s32 %s129, 1
      %p133 = scmp.eq.s32.totalorder %s18, 7
      %p134 = scmp.ne.s32.totalorder %s129, %s131
      %p135 = scmp.eq.s32.totalorder %s18, 0
      %p136 = por %p134, %p135
      %p137 = scmp.ne.s32.totalorder %s129, %s131
      %p138 = scmp.eq.s32.totalorder %s23, 7
      %p139 = por %p137, %p138
      %p140 = scmp.ne.s32.totalorder %s131, %s132
      %p141 = scmp.eq.s32.totalorder %s23, 0
      %p142 = por %p140, %p141
      %p143 = scmp.ne.s32.totalorder %s131, %s132
      %p144 = scmp.eq.s32.totalorder %s24, 7
      %p145 = por %p143, %p144
      %p147 = scmp.ne.s32.totalorder %s132, %s146
      %p148 = scmp.eq.s32.totalorder %s24, 0
      %p149 = por %p147, %p148
      %s151 = sadd.s32 %s150, 1
      %p154 = scmp.eq.s32.totalorder %s18, 7
      %p155 = scmp.ne.s32.totalorder %s150, %s152
      %p156 = scmp.eq.s32.totalorder %s18, 0
      %p157 = por %p155, %p156
      %p158 = scmp.ne.s32.totalorder %s150, %s152
      %p159 = scmp.eq.s32.totalorder %s23, 7
      %p160 = por %p158, %p159
      %p161 = scmp.ne.s32.totalorder %s152, %s153
      %p162 = scmp.eq.s32.totalorder %s23, 0
      %p163 = por %p161, %p162
      %p164 = scmp.ne.s32.totalorder %s152, %s153
      %p165 = scmp.eq.s32.totalorder %s24, 7
      %p166 = por %p164, %p165
      %p168 = scmp.ne.s32.totalorder %s153, %s167
      %p169 = scmp.eq.s32.totalorder %s24, 0
      %p170 = por %p168, %p169
      %s172 = sadd.s32 %s171, 1
      %p175 = scmp.eq.s32.totalorder %s18, 7
      %p176 = scmp.ne.s32.totalorder %s171, %s173
      %p177 = scmp.eq.s32.totalorder %s18, 0
      %p178 = por %p176, %p177
      %p179 = scmp.ne.s32.totalorder %s171, %s173
      %p180 = scmp.eq.s32.totalorder %s23, 7
      %p181 = por %p179, %p180
      %p182 = scmp.ne.s32.totalorder %s173, %s174
      %p183 = scmp.eq.s32.totalorder %s23, 0
      %p184 = por %p182, %p183
      %p185 = scmp.ne.s32.totalorder %s173, %s174
      %p186 = scmp.eq.s32.totalorder %s24, 7
      %p187 = por %p185, %p186
      %p189 = scmp.ne.s32.totalorder %s174, %s188
      %p190 = scmp.eq.s32.totalorder %s24, 0
      %p191 = por %p189, %p190
      %s193 = sadd.s32 %s192, 1
      %p196 = scmp.eq.s32.totalorder %s18, 7
      %p197 = scmp.ne.s32.totalorder %s192, %s194
      %p198 = scmp.eq.s32.totalorder %s18, 0
      %p199 = por %p197, %p198
      %p200 = scmp.ne.s32.totalorder %s192, %s194
      %p201 = scmp.eq.s32.totalorder %s23, 7
      %p202 = por %p200, %p201
      %p203 = scmp.ne.s32.totalorder %s194, %s195
      %p204 = scmp.eq.s32.totalorder %s23, 0
      %p205 = por %p203, %p204
      %p206 = scmp.ne.s32.totalorder %s194, %s195
      %p207 = scmp.eq.s32.totalorder %s24, 7
      %p208 = por %p206, %p207
      %p210 = scmp.ne.s32.totalorder %s195, %s209
      %p211 = scmp.eq.s32.totalorder %s24, 0
      %p212 = por %p210, %p211
      %s214 = sadd.s32 %s213, 1
      %p217 = scmp.eq.s32.totalorder %s18, 7
      %p218 = scmp.ne.s32.totalorder %s213, %s215
      %p219 = scmp.eq.s32.totalorder %s18, 0
      %p220 = por %p218, %p219
      %p221 = scmp.ne.s32.totalorder %s213, %s215
      %p222 = scmp.eq.s32.totalorder %s23, 7
      %p223 = por %p221, %p222
      %p224 = scmp.ne.s32.totalorder %s215, %s216
      %p225 = scmp.eq.s32.totalorder %s23, 0
      %p226 = por %p224, %p225
      %p227 = scmp.ne.s32.totalorder %s215, %s216
      %p228 = scmp.eq.s32.totalorder %s24, 7
      %p229 = por %p227, %p228
      %p231 = scmp.ne.s32.totalorder %s216, %s230
      %p232 = scmp.eq.s32.totalorder %s24, 0
      %p233 = por %p231, %p232
      %s234 = ssub.s32 %s25, %s37
      %p235 = scmp.eq.s32.totalorder %s234, 0
      %s237 = sadd.s32 %s236, 1
      %s238 = scalar_select %p235, %s236, %s237
      %p241 = pneg %p235
      %p242 = scmp.eq.s32.totalorder %s18, 7
      %p243 = por %p241, %p242
      %p244 = scmp.ne.s32.totalorder %s236, %s239
      %p245 = scmp.eq.s32.totalorder %s18, 0
      %p246 = por %p244, %p245
      %p247 = scmp.ne.s32.totalorder %s236, %s239
      %p248 = scmp.eq.s32.totalorder %s23, 7
      %p249 = por %p247, %p248
      %p250 = scmp.ne.s32.totalorder %s239, %s240
      %p251 = scmp.eq.s32.totalorder %s23, 0
      %p252 = por %p250, %p251
      %p253 = scmp.ne.s32.totalorder %s239, %s240
      %p254 = scmp.eq.s32.totalorder %s24, 7
      %p255 = por %p253, %p254
      %p257 = scmp.ne.s32.totalorder %s240, %s256
      %p258 = scmp.eq.s32.totalorder %s24, 0
      %p259 = por %p257, %p258
      %p260 = scmp.le.s32.totalorder 1, %s18
      %p261 = scmp.lt.s32.totalorder %s18, 9
      %p262 = pnand %p260, %p261
      %p263 = pneg %p262
      // Predicated region
      $region9: #{tpu_custom_call.1} parent=5 // pred_check
        _
      $region10: #{tpu_custom_call.1} parent=5 // pred_check_branch
        %265 = sbr.rel (%p262) target = $region12
      $region11: #{tpu_custom_call.1} parent=5 // pred_region
        %s266 = ssub.s32 %s18, 1
        // Predicated region
        $region13: #{tpu_custom_call.1} parent=11 // pred_check
          %p267 = pneg %p79
        $region14: #{tpu_custom_call.1} parent=11 // pred_check_branch
          %269 = sbr.rel (%p267) target = $region16
        $region15: #{tpu_custom_call.1} parent=11 // pred_region
          _
        $region16: #{tpu_custom_call.1} parent=11 // pred_fallthru
          _
        // Predicated region
        $region17: #{tpu_custom_call.1} parent=11 // pred_check
          %p270 = pneg %p100
        $region18: #{tpu_custom_call.1} parent=11 // pred_check_branch
          %272 = sbr.rel (%p270) target = $region20
        $region19: #{tpu_custom_call.1} parent=11 // pred_region
          _
        $region20: #{tpu_custom_call.1} parent=11 // pred_fallthru
          _
        // Predicated region
        $region21: #{tpu_custom_call.1} parent=11 // pred_check
          %p273 = pneg %p121
        $region22: #{tpu_custom_call.1} parent=11 // pred_check_branch
          %275 = sbr.rel (%p273) target = $region24
        $region23: #{tpu_custom_call.1} parent=11 // pred_region
          _
        $region24: #{tpu_custom_call.1} parent=11 // pred_fallthru
          _
        // Predicated region
        $region25: #{tpu_custom_call.1} parent=11 // pred_check
          %p276 = pneg %p142
        $region26: #{tpu_custom_call.1} parent=11 // pred_check_branch
          %278 = sbr.rel (%p276) target = $region28
        $region27: #{tpu_custom_call.1} parent=11 // pred_region
          _
        $region28: #{tpu_custom_call.1} parent=11 // pred_fallthru
          _
        // Predicated region
        $region29: #{tpu_custom_call.1} parent=11 // pred_check
          %p279 = pneg %p163
        $region30: #{tpu_custom_call.1} parent=11 // pred_check_branch
          %281 = sbr.rel (%p279) target = $region32
        $region31: #{tpu_custom_call.1} parent=11 // pred_region
          _
        $region32: #{tpu_custom_call.1} parent=11 // pred_fallthru
          _
        // Predicated region
        $region33: #{tpu_custom_call.1} parent=11 // pred_check
          %p282 = pneg %p184
        $region34: #{tpu_custom_call.1} parent=11 // pred_check_branch
          %284 = sbr.rel (%p282) target = $region36
        $region35: #{tpu_custom_call.1} parent=11 // pred_region
          _
        $region36: #{tpu_custom_call.1} parent=11 // pred_fallthru
          _
        // Predicated region
        $region37: #{tpu_custom_call.1} parent=11 // pred_check
          %p285 = pneg %p205
        $region38: #{tpu_custom_call.1} parent=11 // pred_check_branch
          %287 = sbr.rel (%p285) target = $region40
        $region39: #{tpu_custom_call.1} parent=11 // pred_region
          _
        $region40: #{tpu_custom_call.1} parent=11 // pred_fallthru
          _
        // Predicated region
        $region41: #{tpu_custom_call.1} parent=11 // pred_check
          %p288 = pneg %p226
        $region42: #{tpu_custom_call.1} parent=11 // pred_check_branch
          %290 = sbr.rel (%p288) target = $region44
        $region43: #{tpu_custom_call.1} parent=11 // pred_region
          _
        $region44: #{tpu_custom_call.1} parent=11 // pred_fallthru
          _
      $region12: #{tpu_custom_call.1} parent=5 // pred_fallthru
        _
      %p291 = scmp.lt.s32.totalorder %s18, 8
      // Predicated region
      $region45: #{tpu_custom_call.1} parent=5 // pred_check
        %p292 = pneg %p291
      $region46: #{tpu_custom_call.1} parent=5 // pred_check_branch
        %294 = sbr.rel (%p292) target = $region48
      $region47: #{tpu_custom_call.1} parent=5 // pred_region
        // Predicated region
        $region49: #{tpu_custom_call.1} parent=47 // pred_check
          %p295 = pneg %p52
        $region50: #{tpu_custom_call.1} parent=47 // pred_check_branch
          %297 = sbr.rel (%p295) target = $region52
        $region51: #{tpu_custom_call.1} parent=47 // pred_region
          %s298 = smul.u32 8, %s26
          %p299 = scmp.lt.s32.totalorder %s25, 1
          %s300 = scalar_select %p299, %s25, 1
          %p301 = scmp.lt.s32.totalorder %s298, 31
          %s302 = scalar_select %p301, %s298, 31
          %s303 = smul.addr %s300, 32
          %s304 = sadd.s32 %s302, %s303
          %s305 = smul.addr %s304, 4
          %s306 = scalar_lea.vmem %s0, %s305
          %s307 = smul.u32 8, %s26
        $region52: #{tpu_custom_call.1} parent=47 // pred_fallthru
          _
      $region48: #{tpu_custom_call.1} parent=5 // pred_fallthru
        _
      %p308 = scmp.le.s32.totalorder 1, %s18
      %p309 = scmp.lt.s32.totalorder %s18, 9
      %p310 = pnand %p308, %p309
      %p311 = pneg %p310
      // Predicated region
      $region53: #{tpu_custom_call.1} parent=5 // pred_check
        _
      $region54: #{tpu_custom_call.1} parent=5 // pred_check_branch
        %313 = sbr.rel (%p310) target = $region56
      $region55: #{tpu_custom_call.1} parent=5 // pred_region
        %s314 = ssub.s32 %s18, 1
        %s315 = smul.u32 8, %s28
        %p316 = scmp.lt.s32.totalorder %s27, 1
        %s317 = scalar_select %p316, %s27, 1
        %p318 = scmp.lt.s32.totalorder %s315, 31
        %s319 = scalar_select %p318, %s315, 31
        %s320 = smul.addr %s317, 32
        %s321 = sadd.s32 %s319, %s320
        %s322 = smul.addr %s321, 4
        %s323 = scalar_lea.vmem %s0, %s322
        %p324 = pneg %p58
        %p325 = pneg %p55
        %p326 = pneg %p79
        %p327 = pneg %p76
        %p328 = pneg %p100
        %p329 = pneg %p97
        %p330 = pneg %p121
        %p331 = pneg %p118
        %p332 = pneg %p142
        %p333 = pneg %p139
        %p334 = pneg %p163
        %p335 = pneg %p160
        %p336 = pneg %p184
        %p337 = pneg %p181
        %p338 = pneg %p205
        %p339 = pneg %p202
        %p340 = pneg %p226
        %p341 = pneg %p223
        %p342 = pneg %p252
        %p343 = pneg %p249
        %s344 = sand.u32 %s239, 1
        %s345 = scalar_lea.sflag [#allocation4], %s344
        %s346 = sand.u32 %s239, 1
        %s347 = scalar_lea.vmem [#allocation3], %s346
        %s348 = smul.u32 8, %s28
        %p349 = scmp.lt.s32.totalorder %s27, 1
        %s350 = scalar_select %p349, %s27, 1
        %p351 = scmp.lt.s32.totalorder %s348, 31
        %s352 = scalar_select %p351, %s348, 31
        %s353 = smul.addr %s350, 32
        %s354 = sadd.s32 %s352, %s353
        %s355 = smul.addr %s354, 4
        %s356 = scalar_lea.vmem %s0, %s355
        %s357 = smul.u32 8, %s28
        %p358 = scmp.eq.s32.totalorder %s28, 0
        // Predicated region
        $region57: #{tpu_custom_call.1} parent=55 // pred_check
          %p359 = pneg %p358
        $region58: #{tpu_custom_call.1} parent=55 // pred_check_branch
          %361 = sbr.rel (%p359) target = $region60
        $region59: #{tpu_custom_call.1} parent=55 // pred_region
          %362 = vst [vmem:[#allocation2] sm:$0x1] -inf
        $region60: #{tpu_custom_call.1} parent=55 // pred_fallthru
          _
        %v363 = vld [vmem:[%s356] sm:$0xf]
        %v364 = vld [vmem:[%s356 + $0x4] sm:$0xf]
        %v365 = vld [vmem:[%s356 + $0x8] sm:$0xf]
        %v366 = vld [vmem:[%s356 + $0xc] sm:$0xf]
        %v367 = vld [vmem:[%s356 + $0x10] sm:$0xf]
        %v368 = vld [vmem:[%s356 + $0x14] sm:$0xf]
        %v369 = vld [vmem:[%s356 + $0x18] sm:$0xf]
        %v370 = vld [vmem:[%s356 + $0x1c] sm:$0xf]
        %v371 = vld [vmem:[%s1] sm:$0x3]
        %v372 = vld [vmem:[%s2] sm:$0x1]
        %v373 = vunpack.c.l.bf16 %v363
        %v374 = vunpack.c.l.bf16 %v364
        %v375 = vunpack.c.l.bf16 %v365
        %v376 = vunpack.c.l.bf16 %v366
        %v377 = vunpack.c.l.bf16 %v367
        %v378 = vunpack.c.l.bf16 %v368
        %v379 = vunpack.c.l.bf16 %v369
        %v380 = vunpack.c.l.bf16 %v370
        %v381 = vunpack.c.l.bf16 %v371
        %383 = vset.pattern.permute.xlu0 0
        %384 = vperm.xlu0 %383, %v373
        %v385 = vpop.permute.xlu0 %384
        %388 = vset.pattern.permute.xlu0 0
        %389 = vperm.xlu0 %388, %v374
        %v390 = vpop.permute.xlu0 %389
        %393 = vset.pattern.permute.xlu0 0
        %394 = vperm.xlu0 %393, %v375
        %v395 = vpop.permute.xlu0 %394
        %398 = vset.pattern.permute.xlu0 0
        %399 = vperm.xlu0 %398, %v376
        %v400 = vpop.permute.xlu0 %399
        %403 = vset.pattern.permute.xlu0 0
        %404 = vperm.xlu0 %403, %v377
        %v405 = vpop.permute.xlu0 %404
        %408 = vset.pattern.permute.xlu0 0
        %409 = vperm.xlu0 %408, %v378
        %v410 = vpop.permute.xlu0 %409
        %413 = vset.pattern.permute.xlu0 0
        %414 = vperm.xlu0 %413, %v379
        %v415 = vpop.permute.xlu0 %414
        %418 = vset.pattern.permute.xlu0 0
        %419 = vperm.xlu0 %418, %v380
        %v420 = vpop.permute.xlu0 %419
        %v422 = vperm.slane %v381, 0
        %v423 = vmul.f32 %v385, %v422
        %v424 = vmul.f32 %v390, %v422
        %v425 = vmul.f32 %v395, %v422
        %v426 = vmul.f32 %v400, %v422
        %v427 = vmul.f32 %v405, %v422
        %v428 = vmul.f32 %v410, %v422
        %v429 = vmul.f32 %v415, %v422
        %v430 = vmul.f32 %v420, %v422
        %v431 = vadd.f32 %v423, 0.0
        %v432 = vadd.f32 %v424, 0.0
        %v433 = vadd.f32 %v425, 0.0
        %v434 = vadd.f32 %v426, 0.0
        %v435 = vadd.f32 %v427, 0.0
        %v436 = vadd.f32 %v428, 0.0
        %v437 = vadd.f32 %v429, 0.0
        %v438 = vadd.f32 %v430, 0.0
        %439 = vset.pattern.permute.xlu0 1
        %440 = vperm.xlu0 %439, %v373
        %v441 = vpop.permute.xlu0 %440
        %443 = vset.pattern.permute.xlu0 1
        %444 = vperm.xlu0 %443, %v374
        %v445 = vpop.permute.xlu0 %444
        %447 = vset.pattern.permute.xlu0 1
        %448 = vperm.xlu0 %447, %v375
        %v449 = vpop.permute.xlu0 %448
        %451 = vset.pattern.permute.xlu0 1
        %452 = vperm.xlu0 %451, %v376
        %v453 = vpop.permute.xlu0 %452
        %455 = vset.pattern.permute.xlu0 1
        %456 = vperm.xlu0 %455, %v377
        %v457 = vpop.permute.xlu0 %456
        %459 = vset.pattern.permute.xlu0 1
        %460 = vperm.xlu0 %459, %v378
        %v461 = vpop.permute.xlu0 %460
        %463 = vset.pattern.permute.xlu0 1
        %464 = vperm.xlu0 %463, %v379
        %v465 = vpop.permute.xlu0 %464
        %467 = vset.pattern.permute.xlu0 1
        %468 = vperm.xlu0 %467, %v380
        %v469 = vpop.permute.xlu0 %468
        %v471 = vperm.slane %v381, 1
        %v472 = vmul.f32 %v441, %v471
        %v473 = vmul.f32 %v445, %v471
        %v474 = vmul.f32 %v449, %v471
        %v475 = vmul.f32 %v453, %v471
        %v476 = vmul.f32 %v457, %v471
        %v477 = vmul.f32 %v461, %v471
        %v478 = vmul.f32 %v465, %v471
        %v479 = vmul.f32 %v469, %v471
        %v480 = vadd.f32 %v431, %v472
        %v481 = vadd.f32 %v432, %v473
        %v482 = vadd.f32 %v433, %v474
        %v483 = vadd.f32 %v434, %v475
        %v484 = vadd.f32 %v435, %v476
        %v485 = vadd.f32 %v436, %v477
        %v486 = vadd.f32 %v437, %v478
        %v487 = vadd.f32 %v438, %v479
        %488 = vset.pattern.permute.xlu0 2
        %489 = vperm.xlu0 %488, %v373
        %v490 = vpop.permute.xlu0 %489
        %492 = vset.pattern.permute.xlu0 2
        %493 = vperm.xlu0 %492, %v374
        %v494 = vpop.permute.xlu0 %493
        %496 = vset.pattern.permute.xlu0 2
        %497 = vperm.xlu0 %496, %v375
        %v498 = vpop.permute.xlu0 %497
        %500 = vset.pattern.permute.xlu0 2
        %501 = vperm.xlu0 %500, %v376
        %v502 = vpop.permute.xlu0 %501
        %504 = vset.pattern.permute.xlu0 2
        %505 = vperm.xlu0 %504, %v377
        %v506 = vpop.permute.xlu0 %505
        %508 = vset.pattern.permute.xlu0 2
        %509 = vperm.xlu0 %508, %v378
        %v510 = vpop.permute.xlu0 %509
        %512 = vset.pattern.permute.xlu0 2
        %513 = vperm.xlu0 %512, %v379
        %v514 = vpop.permute.xlu0 %513
        %516 = vset.pattern.permute.xlu0 2
        %517 = vperm.xlu0 %516, %v380
        %v518 = vpop.permute.xlu0 %517
        %v520 = vperm.slane %v381, 2
        %v521 = vmul.f32 %v490, %v520
        %v522 = vmul.f32 %v494, %v520
        %v523 = vmul.f32 %v498, %v520
        %v524 = vmul.f32 %v502, %v520
        %v525 = vmul.f32 %v506, %v520
        %v526 = vmul.f32 %v510, %v520
        %v527 = vmul.f32 %v514, %v520
        %v528 = vmul.f32 %v518, %v520
        %v529 = vadd.f32 %v480, %v521
        %v530 = vadd.f32 %v481, %v522
        %v531 = vadd.f32 %v482, %v523
        %v532 = vadd.f32 %v483, %v524
        %v533 = vadd.f32 %v484, %v525
        %v534 = vadd.f32 %v485, %v526
        %v535 = vadd.f32 %v486, %v527
        %v536 = vadd.f32 %v487, %v528
        %v538 = vperm.slane %v372, 0
        %v540 = vadd.f32 %v529, %v538
        %v541 = vadd.f32 %v530, %v538
        %v542 = vadd.f32 %v531, %v538
        %v543 = vadd.f32 %v532, %v538
        %v544 = vadd.f32 %v533, %v538
        %v545 = vadd.f32 %v534, %v538
        %v546 = vadd.f32 %v535, %v538
        %v547 = vadd.f32 %v536, %v538
        %v548 = vmax.f32 %v540, 0.0
        %v549 = vmax.f32 %v541, 0.0
        %v550 = vmax.f32 %v542, 0.0
        %v551 = vmax.f32 %v543, 0.0
        %v552 = vmax.f32 %v544, 0.0
        %v553 = vmax.f32 %v545, 0.0
        %v554 = vmax.f32 %v546, 0.0
        %v555 = vmax.f32 %v547, 0.0
        %v556 = vld [vmem:[%s3] sm:$0xf]
        %v557 = vld [vmem:[%s3 + $0x4] sm:$0xf]
        %v558 = vld [vmem:[%s3 + $0x8] sm:$0xf]
        %v559 = vld [vmem:[%s3 + $0xc] sm:$0xf]
        %v560 = vld [vmem:[%s3 + $0x10] sm:$0xf]
        %v561 = vld [vmem:[%s3 + $0x14] sm:$0xf]
        %v562 = vld [vmem:[%s3 + $0x18] sm:$0xf]
        %v563 = vld [vmem:[%s3 + $0x1c] sm:$0xf]
        %v564 = vld [vmem:[%s3 + $0x20] sm:$0xf]
        %v565 = vld [vmem:[%s3 + $0x24] sm:$0xf]
        %v566 = vld [vmem:[%s3 + $0x28] sm:$0xf]
        %v567 = vld [vmem:[%s3 + $0x2c] sm:$0xf]
        %v568 = vld [vmem:[%s3 + $0x30] sm:$0xf]
        %v569 = vld [vmem:[%s3 + $0x34] sm:$0xf]
        %v570 = vld [vmem:[%s3 + $0x38] sm:$0xf]
        %v571 = vld [vmem:[%s3 + $0x3c] sm:$0xf]
        %v572 = vld [vmem:[%s4] sm:$0x1]
        %v573 = vpack.c.bf16 %v549, %v548
        %v574 = vpack.c.bf16 %v551, %v550
        %v575 = vpack.c.bf16 %v553, %v552
        %v576 = vpack.c.bf16 %v555, %v554
        %v578 = vperm.slane %v572, 0
        %v596 = vunpack.c.l.b16 %v556
        %v597 = vunpack.c.l.b16 %v557
        %v598 = vunpack.c.l.b16 %v558
        %v599 = vunpack.c.l.b16 %v559
        %v600 = vunpack.c.l.b16 %v560
        %v601 = vunpack.c.l.b16 %v561
        %v602 = vunpack.c.l.b16 %v562
        %v603 = vunpack.c.l.b16 %v563
        %v604 = vunpack.c.l.b16 %v564
        %v605 = vunpack.c.l.b16 %v565
        %v606 = vunpack.c.l.b16 %v566
        %v607 = vunpack.c.l.b16 %v567
        %v608 = vunpack.c.l.b16 %v568
        %v609 = vunpack.c.l.b16 %v569
        %v610 = vunpack.c.l.b16 %v570
        %v611 = vunpack.c.l.b16 %v571
        %v612 = vpack.c.b16 %v597, %v596
        %v613 = vpack.c.b16 %v599, %v598
        %v614 = vpack.c.b16 %v601, %v600
        %v615 = vpack.c.b16 %v603, %v602
        %v616 = vpack.c.b16 %v605, %v604
        %v617 = vpack.c.b16 %v607, %v606
        %v618 = vpack.c.b16 %v609, %v608
        %v619 = vpack.c.b16 %v611, %v610
        %628 = vmatpush.bf16.msra.mxu0 %v619
        %629 = vmatpush.bf16.msra.mxu0 %v618
        %630 = vmatpush.bf16.msra.mxu0 %v617
        %631 = vmatpush.bf16.msra.mxu0 %v616
        %632 = vmatpush.bf16.msra.mxu0 %v615
        %633 = vmatpush.bf16.msra.mxu0 %v614
        %634 = vmatpush.bf16.msra.mxu0 %v613
        %635 = vmatpush.bf16.msra.mxu0 %v612
        %636 = vmatmul.bf16.gmra.mxu0 %v573
        %v637 = vpop.f32.mrf.mxu0
        %v638 = vadd.f32 %v578, %v637
        %v639 = vpop.f32.mrf.mxu0
        %v640 = vadd.f32 %v578, %v639
        %641 = vmatmul.bf16.gmra.mxu0 %v574
        %v642 = vpop.f32.mrf.mxu0
        %v643 = vadd.f32 %v578, %v642
        %v644 = vpop.f32.mrf.mxu0
        %v645 = vadd.f32 %v578, %v644
        %646 = vmatmul.bf16.gmra.mxu0 %v575
        %v647 = vpop.f32.mrf.mxu0
        %v648 = vadd.f32 %v578, %v647
        %v649 = vpop.f32.mrf.mxu0
        %v650 = vadd.f32 %v578, %v649
        %651 = vmatmul.bf16.gmra.mxu0 %v576
        %v652 = vpop.f32.mrf.mxu0
        %v653 = vadd.f32 %v578, %v652
        %v654 = vpop.f32.mrf.mxu0
        %v655 = vadd.f32 %v578, %v654
        %656 = vdwg.mxu0
        %v657 = vmax.f32 %v638, %v648
        %v658 = vmax.f32 %v640, %v650
        %v659 = vmax.f32 %v643, %v653
        %v660 = vmax.f32 %v645, %v655
        %v661 = vmax.f32 %v657, %v658
        %v662 = vmax.f32 %v659, %v660
        %v663 = vmax.f32 %v661, %v662
        %v664 = vrot.slane %v663, 4
        %v665 = vmax.f32 %v663, %v664
        %v666 = vrot.slane %v665, 2
        %v667 = vmax.f32 %v665, %v666
        %v668 = vrot.slane %v667, 1
        %v669 = vmax.f32 %v667, %v668
        %v670 = vld [vmem:[#allocation2] sm:$0x1]
        %v671 = vmax.f32 %v670, %v669
        %672 = vst [vmem:[#allocation2] sm:$0x1] %v671
        %p673 = scmp.eq.s32.totalorder %s28, 3
        // Predicated region
        $region61: #{tpu_custom_call.1} parent=55 // pred_check
          %p674 = pneg %p673
        $region62: #{tpu_custom_call.1} parent=55 // pred_check_branch
          %676 = sbr.rel (%p674) target = $region64
        $region63: #{tpu_custom_call.1} parent=55 // pred_region
          %v677 = vld [vmem:[#allocation2] sm:$0x1]
          %v678 = vld [vmem:[%s5] sm:$0xf]
          %v679 = vld [vmem:[%s5 + $0x4] sm:$0xf]
          %v680 = vld [vmem:[%s5 + $0x8] sm:$0xf]
          %v681 = vld [vmem:[%s5 + $0xc] sm:$0xf]
          %v682 = vld [vmem:[%s5 + $0x10] sm:$0xf]
          %v683 = vld [vmem:[%s5 + $0x14] sm:$0xf]
          %v684 = vld [vmem:[%s5 + $0x18] sm:$0xf]
          %v685 = vld [vmem:[%s5 + $0x1c] sm:$0xf]
          %v686 = vld [vmem:[%s5 + $0x20] sm:$0xf]
          %v687 = vld [vmem:[%s5 + $0x24] sm:$0xf]
          %v688 = vld [vmem:[%s5 + $0x28] sm:$0xf]
          %v689 = vld [vmem:[%s5 + $0x2c] sm:$0xf]
          %v690 = vld [vmem:[%s5 + $0x30] sm:$0xf]
          %v691 = vld [vmem:[%s5 + $0x34] sm:$0xf]
          %v692 = vld [vmem:[%s5 + $0x38] sm:$0xf]
          %v693 = vld [vmem:[%s5 + $0x3c] sm:$0xf]
          %v694 = vld [vmem:[%s6] sm:$0x1]
          %v695 = vpack.c.bf16 %v677, %v677
          %v712 = vunpack.c.l.b16 %v678
          %v713 = vunpack.c.l.b16 %v679
          %v714 = vunpack.c.l.b16 %v680
          %v715 = vunpack.c.l.b16 %v681
          %v716 = vunpack.c.l.b16 %v682
          %v717 = vunpack.c.l.b16 %v683
          %v718 = vunpack.c.l.b16 %v684
          %v719 = vunpack.c.l.b16 %v685
          %v720 = vunpack.c.l.b16 %v686
          %v721 = vunpack.c.l.b16 %v687
          %v722 = vunpack.c.l.b16 %v688
          %v723 = vunpack.c.l.b16 %v689
          %v724 = vunpack.c.l.b16 %v690
          %v725 = vunpack.c.l.b16 %v691
          %v726 = vunpack.c.l.b16 %v692
          %v727 = vunpack.c.l.b16 %v693
          %v728 = vpack.c.b16 %v713, %v712
          %v729 = vpack.c.b16 %v715, %v714
          %v730 = vpack.c.b16 %v717, %v716
          %v731 = vpack.c.b16 %v719, %v718
          %v732 = vpack.c.b16 %v721, %v720
          %v733 = vpack.c.b16 %v723, %v722
          %v734 = vpack.c.b16 %v725, %v724
          %v735 = vpack.c.b16 %v727, %v726
          %744 = vmatpush.bf16.msra.mxu0 %v735
          %745 = vmatpush.bf16.msra.mxu0 %v734
          %746 = vmatpush.bf16.msra.mxu0 %v733
          %747 = vmatpush.bf16.msra.mxu0 %v732
          %748 = vmatpush.bf16.msra.mxu0 %v731
          %749 = vmatpush.bf16.msra.mxu0 %v730
          %750 = vmatpush.bf16.msra.mxu0 %v729
          %751 = vmatpush.bf16.msra.mxu0 %v728
          %752 = vmatmul.bf16.gmra.mxu0 %v695
          %v753 = vpop.f32.mrf.mxu0
          %v754 = vadd.f32 %v694, %v753
          %v755 = vpop.f32.mrf.mxu0
          %756 = vdwg.mxu0
          %v757 = vmax.f32 %v754, 0.0
          %v758 = vld [vmem:[%s7] sm:$0xf]
          %v759 = vld [vmem:[%s7 + $0x4] sm:$0xf]
          %v760 = vld [vmem:[%s7 + $0x8] sm:$0xf]
          %v761 = vld [vmem:[%s7 + $0xc] sm:$0xf]
          %v762 = vld [vmem:[%s7 + $0x10] sm:$0xf]
          %v763 = vld [vmem:[%s7 + $0x14] sm:$0xf]
          %v764 = vld [vmem:[%s7 + $0x18] sm:$0xf]
          %v765 = vld [vmem:[%s7 + $0x1c] sm:$0xf]
          %v766 = vld [vmem:[%s7 + $0x20] sm:$0xf]
          %v767 = vld [vmem:[%s7 + $0x24] sm:$0xf]
          %v768 = vld [vmem:[%s7 + $0x28] sm:$0xf]
          %v769 = vld [vmem:[%s7 + $0x2c] sm:$0xf]
          %v770 = vld [vmem:[%s7 + $0x30] sm:$0xf]
          %v771 = vld [vmem:[%s7 + $0x34] sm:$0xf]
          %v772 = vld [vmem:[%s7 + $0x38] sm:$0xf]
          %v773 = vld [vmem:[%s7 + $0x3c] sm:$0xf]
          %v774 = vld [vmem:[%s8] sm:$0x1]
          %v775 = vpack.c.bf16 %v757, %v757
          %v792 = vunpack.c.l.b16 %v758
          %v793 = vunpack.c.l.b16 %v759
          %v794 = vunpack.c.l.b16 %v760
          %v795 = vunpack.c.l.b16 %v761
          %v796 = vunpack.c.l.b16 %v762
          %v797 = vunpack.c.l.b16 %v763
          %v798 = vunpack.c.l.b16 %v764
          %v799 = vunpack.c.l.b16 %v765
          %v800 = vunpack.c.l.b16 %v766
          %v801 = vunpack.c.l.b16 %v767
          %v802 = vunpack.c.l.b16 %v768
          %v803 = vunpack.c.l.b16 %v769
          %v804 = vunpack.c.l.b16 %v770
          %v805 = vunpack.c.l.b16 %v771
          %v806 = vunpack.c.l.b16 %v772
          %v807 = vunpack.c.l.b16 %v773
          %v808 = vpack.c.b16 %v793, %v792
          %v809 = vpack.c.b16 %v795, %v794
          %v810 = vpack.c.b16 %v797, %v796
          %v811 = vpack.c.b16 %v799, %v798
          %v812 = vpack.c.b16 %v801, %v800
          %v813 = vpack.c.b16 %v803, %v802
          %v814 = vpack.c.b16 %v805, %v804
          %v815 = vpack.c.b16 %v807, %v806
          %824 = vmatpush.bf16.msra.mxu0 %v815
          %825 = vmatpush.bf16.msra.mxu0 %v814
          %826 = vmatpush.bf16.msra.mxu0 %v813
          %827 = vmatpush.bf16.msra.mxu0 %v812
          %828 = vmatpush.bf16.msra.mxu0 %v811
          %829 = vmatpush.bf16.msra.mxu0 %v810
          %830 = vmatpush.bf16.msra.mxu0 %v809
          %831 = vmatpush.bf16.msra.mxu0 %v808
          %832 = vmatmul.bf16.gmra.mxu0 %v775
          %v833 = vpop.f32.mrf.mxu0
          %v834 = vadd.f32 %v774, %v833
          %v835 = vpop.f32.mrf.mxu0
          %836 = vdwg.mxu0
          %837 = vst [vmem:[%s347] sm:$0x1] %v834
        $region64: #{tpu_custom_call.1} parent=55 // pred_fallthru
          _
        %s838 = sand.u32 %s239, 1
        %s839 = scalar_lea.sflag [#allocation4], %s838
        %s840 = sand.u32 %s239, 1
        %s841 = scalar_lea.vmem [#allocation3], %s840
        // Predicated region
        $region65: #{tpu_custom_call.1} parent=55 // pred_check
          %p842 = pneg %p249
        $region66: #{tpu_custom_call.1} parent=55 // pred_check_branch
          %844 = sbr.rel (%p842) target = $region68
        $region67: #{tpu_custom_call.1} parent=55 // pred_region
          %846 = vsyncadd %s839, 0
          %s847 = scalar_lea.hbm %s9, %s27
          %s849 = sshll.u32 %s841, 4
          %s850 = int_to_ptr.vmem [resolvable:$true] %s849
          %s851 = sshll.u32 %s847, 4
          %s852 = int_to_ptr.hbm [resolvable:$true] %s851
          %854 = dma.vmem_to_hbm [thread:$0]  %s850, 16, %s852, %s839
        $region68: #{tpu_custom_call.1} parent=55 // pred_fallthru
          _
      $region56: #{tpu_custom_call.1} parent=5 // pred_fallthru
        _
      %p855 = scmp.le.s32.totalorder 2, %s18
      // Predicated region
      $region69: #{tpu_custom_call.1} parent=5 // pred_check
        %p856 = pneg %p855
      $region70: #{tpu_custom_call.1} parent=5 // pred_check_branch
        %858 = sbr.rel (%p856) target = $region72
      $region71: #{tpu_custom_call.1} parent=5 // pred_region
        %s859 = ssub.s32 %s18, 2
        // Predicated region
        $region73: #{tpu_custom_call.1} parent=71 // pred_check
          %p860 = pneg %p255
        $region74: #{tpu_custom_call.1} parent=71 // pred_check_branch
          %862 = sbr.rel (%p860) target = $region76
        $region75: #{tpu_custom_call.1} parent=71 // pred_region
          %s863 = sand.u32 %s240, 1
          %s864 = scalar_lea.sflag [#allocation4], %s863
          %s865 = sand.u32 %s240, 1
          %s866 = scalar_lea.vmem [#allocation3], %s865
          %868 = dma.done %s864, 16
        $region76: #{tpu_custom_call.1} parent=71 // pred_fallthru
          _
      $region72: #{tpu_custom_call.1} parent=5 // pred_fallthru
        _
    $region6: #{tpu_custom_call.1} parent=1 // loop_footer
      %s22 = sadd.s32 1, %s18
    $region7: #{tpu_custom_call.1} parent=1 // loop_footer_branch
      %17 = sbr.rel target = $region3
    $region8: #{tpu_custom_call.1} parent=1 // loop_exit
      _
    %869 = vsyncpa [#allocation4], 1
    %s870 = scalar_lea.sflag [#allocation4], 1
    %871 = vsyncpa %s870, 1

</llo_original>
